<compile_context>
chip_gen: v7x
topology: tpu7x:2x2x1
jax: 0.10.0
libtpu: 0.0.40
codegen_flags: <defaults>
</compile_context>

<pallas_src>
import jax
import jax.numpy as jnp
from jax.experimental import pallas as pl
from jax.experimental.pallas import tpu as pltpu


_COMPUTE_DTYPE = jnp.bfloat16


def _round_up(n, m):
    return ((n + m - 1) // m) * m


def _cdiv(a, b):
    return -(-a // b)


def _is_v5e():
    """The W2 split only pays off on v5e's 128-wide MXU; v6e/v7x keep the 256-wide form."""
    try:
        kind = jax.devices()[0].device_kind.lower().replace(" ", "")
    except Exception:
        return False
    return ("v5lite" in kind) or ("v5e" in kind)


# --------------------------------------------------------------------------- kernels

def _fused_kernel(x_ref, w1_ref, b1_ref, w2_ref, b2_ref, w3_ref, b3_ref, out_ref):
    """v6e/v7x path: 256-wide block-diagonal middle matmul fills the 2x256^2 MXU."""
    cd = w1_ref.dtype
    h = jnp.dot(x_ref[...], w1_ref[...], preferred_element_type=jnp.float32)
    h = jnp.maximum(h + b1_ref[...], 0.0).astype(cd)
    h = jnp.dot(h, w2_ref[...], preferred_element_type=jnp.float32)
    h = jnp.maximum(h + b2_ref[...], 0.0).astype(cd)
    y = jnp.dot(h, w3_ref[...], preferred_element_type=jnp.float32) + b3_ref[...]
    out_ref[...] = y.astype(out_ref.dtype)          # single lane-dense 128-wide store


def _split_kernel(x_ref, w1_ref, b1_ref, w2_ref, b2_ref, w3_ref, b3_ref, out_ref):
    """v5e path: two dense 128x128 matmuls on W2's diagonal blocks (no zero passes)."""
    cd = w1_ref.dtype
    h = jnp.dot(x_ref[...], w1_ref[...], preferred_element_type=jnp.float32)
    h = jnp.maximum(h + b1_ref[...], 0.0).astype(cd)
    # 128-lane-aligned slices of the activation and of W2's diagonal blocks: cheap.
    ga = jnp.dot(h[:, :128], w2_ref[0:128, 0:128], preferred_element_type=jnp.float32)
    gb = jnp.dot(h[:, 128:], w2_ref[128:256, 128:256], preferred_element_type=jnp.float32)
    g = jnp.concatenate([ga, gb], axis=-1)          # vreg-aligned 128|128 concat
    g = jnp.maximum(g + b2_ref[...], 0.0).astype(cd)
    y = jnp.dot(g, w3_ref[...], preferred_element_type=jnp.float32) + b3_ref[...]
    out_ref[...] = y.astype(out_ref.dtype)


# ------------------------------------------------------------------- weight packing

def pack_params(params, *, compute_dtype=_COMPUTE_DTYPE):
    """Build the fused/packed weights ONCE (hoisted out of the per-call path).

    params: (w11,b11,w12,b12,w13,b13, w21,b21,w22,b22,w23,b23) with weights stored
    as (in_features, out_features) and biases as (1, out_features).
    """
    (w11, b11, w12, b12, w13, b13,
     w21, b21, w22, b22, w23, b23) = params
    cd = compute_dtype

    W1 = jnp.zeros((8, 256), jnp.float32)
    W1 = W1.at[0:3, 0:128].set(w11).at[3:6, 128:256].set(w21).astype(cd)
    W2 = jnp.zeros((256, 256), jnp.float32)
    W2 = W2.at[0:128, 0:128].set(w12).at[128:256, 128:256].set(w22).astype(cd)
    W3 = jnp.zeros((256, 128), jnp.float32)
    W3 = W3.at[0:128, 0:64].set(w13).at[128:256, 64:128].set(w23).astype(cd)

    B1 = jnp.concatenate([b11.reshape(1, 128), b21.reshape(1, 128)], -1).astype(jnp.float32)
    B2 = jnp.concatenate([b12.reshape(1, 128), b22.reshape(1, 128)], -1).astype(jnp.float32)
    B3 = jnp.concatenate([b13.reshape(1, 64), b23.reshape(1, 64)], -1).astype(jnp.float32)

    return tuple(jax.device_put(w) for w in (W1, B1, W2, B2, W3, B3))


# -------------------------------------------------------------------------- wrapper

def hand_root_encoder(x1, x2, packed, *, split=None, out_dtype=jnp.float32,
                      max_tile_b=4096):
    """x1, x2: (B, 3) float32 (anything reshapeable to (B,3)).  Returns (B, 128)."""
    if split is None:
        split = _is_v5e()
    W1, B1, W2, B2, W3, B3 = packed
    cd = W1.dtype
    B = x1.shape[0]

    # Pack [x1 | x2 | 0 0] -> (B, 8) bf16: one aligned K=8 MXU operand and a single
    # tiny input stream (~16 B/row vs the 512 B/row f32 output).  Under jit this pack
    # fuses into the producer of x1/x2.
    x = jnp.concatenate([x1.reshape(B, 3), x2.reshape(B, 3)], axis=-1)
    x = jnp.pad(x, ((0, 0), (0, 2))).astype(cd)

    out_isize = jnp.dtype(out_dtype).itemsize
    x_isize = jnp.dtype(cd).itemsize

    # Batch tile: big enough to amortize per-grid-step overhead (~0.35us), small enough
    # to stay well inside v7x's 64 MiB VMEM, and capped at ceil(B/2) so moderate B
    # still yields >=2 grid steps for the 2 TensorCores on v7x.
    per_row_vmem = (2 * 128 * x_isize        # x tile (lane-padded to 128), double-buffered
                    + 2 * 128 * out_isize    # out tile, double-buffered
                    + 4 * 256 * 4)           # headroom: f32 intermediates + bf16 casts
    vmem_cap = (36 * 2**20) // per_row_vmem
    tile_b = min(max_tile_b, vmem_cap, _round_up(_cdiv(B, 2), 8))
    tile_b = max(8, (tile_b // 8) * 8)
    grid = (_cdiv(B, tile_b),)               # ragged final block handled by Pallas

    resident = lambda i: (0, 0)              # weights/biases stay VMEM-resident across steps
    w_specs = [pl.BlockSpec(w.shape, resident) for w in packed]

    kernel = _split_kernel if split else _fused_kernel
    n_w = 8 * 256 + 256 * 256 + 256 * 128
    w_bytes = sum(int(w.size) * jnp.dtype(w.dtype).itemsize for w in packed)
    bytes_accessed = int(B * 8 * x_isize + B * 128 * out_isize + w_bytes)

    vmem_limit = int(tile_b * per_row_vmem * 1.5) + 2 * w_bytes + (2 << 20)
    vmem_limit = int(min(56 << 20, max(32 << 20, vmem_limit)))

    # TODO(synk): once tile_b is large, sweep pipeline_mode=pl.Buffered(3) on out_specs
    # (v6e output-writeback hiding); left at the default depth here for portability.
    return pl.pallas_call(
        kernel,
        out_shape=jax.ShapeDtypeStruct((B, 128), out_dtype),
        grid=grid,
        in_specs=[pl.BlockSpec((tile_b, 8), lambda i: (i, 0))] + w_specs,
        out_specs=pl.BlockSpec((tile_b, 128), lambda i: (i, 0)),
        compiler_params=pltpu.CompilerParams(
            dimension_semantics=("parallel",),
            vmem_limit_bytes=vmem_limit,
        ),
        cost_estimate=pl.CostEstimate(
            flops=2 * B * n_w, transcendentals=0, bytes_accessed=bytes_accessed),
    )(x, *packed)


# ----------------------------------------------------------------- init & reference

def init_params(key):
    """Deterministic synthetic init matching nn.Linear shapes (stored as (in, out))."""
    ks = jax.random.split(key, 6)

    def lin(k, fan_in, fan_out):
        kw, kb = jax.random.split(k)
        bound = 1.0 / jnp.sqrt(fan_in)
        w = jax.random.uniform(kw, (fan_in, fan_out), jnp.float32, -bound, bound)
        b = jax.random.uniform(kb, (1, fan_out), jnp.float32, -bound, bound)
        return w, b

    w11, b11 = lin(ks[0], 3, 128)
    w12, b12 = lin(ks[1], 128, 128)
    w13, b13 = lin(ks[2], 128, 64)
    w21, b21 = lin(ks[3], 3, 128)
    w22, b22 = lin(ks[4], 128, 128)
    w23, b23 = lin(ks[5], 128, 64)
    return (w11, b11, w12, b12, w13, b13,
            w21, b21, w22, b22, w23, b23)


def _reference(x1, x2, params, compute_dtype=jnp.float32):
    """Pure-JAX reference; with compute_dtype=bf16 it mirrors the kernel's math."""
    (w11, b11, w12, b12, w13, b13,
     w21, b21, w22, b22, w23, b23) = params

    def lin(x, w, b):
        return jnp.dot(x.astype(compute_dtype), w.astype(compute_dtype),
                       preferred_element_type=jnp.float32) + b

    def mlp(x, wa, ba, wb, bb, wc, bc):
        h = jnp.maximum(lin(x, wa, ba), 0.0)
        h = jnp.maximum(lin(h, wb, bb), 0.0)
        return lin(h, wc, bc)

    y1 = mlp(x1.reshape(-1, 3), w11, b11, w12, b12, w13, b13)
    y2 = mlp(x2.reshape(-1, 3), w21, b21, w22, b22, w23, b23)
    return jnp.concatenate([y1, y2], axis=-1)


# ------------------------------------------------------------------------------ main

if __name__ == "__main__":
    key = jax.random.PRNGKey(0)
    kp, k1, k2 = jax.random.split(key, 3)
    params = init_params(kp)
    packed = pack_params(params)   # hoisted: built once, reused for every call below

    # Small test (batch=2), checking BOTH kernel bodies against the references.
    B = 2
    x1 = jax.random.normal(k1, (B, 3), jnp.float32)
    x2 = jax.random.normal(k2, (B, 3), jnp.float32)
    ref_bf16 = _reference(x1, x2, params, compute_dtype=jnp.bfloat16)  # mirrors kernel math
    ref_f32 = _reference(x1, x2, params, compute_dtype=jnp.float32)    # module semantics

    for split in (False, True):
        out = jax.block_until_ready(hand_root_encoder(x1, x2, packed, split=split))
        assert out.shape == (B, 128), out.shape
        assert jnp.allclose(out, ref_bf16, atol=2e-3, rtol=2e-3), \
            float(jnp.max(jnp.abs(out - ref_bf16)))
        assert jnp.allclose(out, ref_f32, atol=5e-2, rtol=0.0), \
            float(jnp.max(jnp.abs(out - ref_f32)))

    # Multi-step grid + ragged final block (exercises the no-padding / no-slice path).
    B2 = 20
    x1b = jax.random.normal(k1, (B2, 3), jnp.float32)
    x2b = jax.random.normal(k2, (B2, 3), jnp.float32)
    outb = jax.block_until_ready(hand_root_encoder(x1b, x2b, packed))  # auto chip path
    assert outb.shape == (B2, 128), outb.shape
    refb = _reference(x1b, x2b, params, compute_dtype=jnp.float32)
    assert jnp.allclose(outb, refb, atol=5e-2, rtol=0.0), \
        float(jnp.max(jnp.abs(outb - refb)))

    print("KERNEL_OK")
</pallas_src>

<mosaic_0001>
module attributes {stable_mosaic.version = 11 : i64} {
  func.func @_fused_kernel(%arg0: i32, %arg1: memref<8x8xbf16, #tpu.memory_space<vmem>>, %arg2: memref<8x256xbf16, #tpu.memory_space<vmem>>, %arg3: memref<1x256xf32, #tpu.memory_space<vmem>>, %arg4: memref<256x256xbf16, #tpu.memory_space<vmem>>, %arg5: memref<1x256xf32, #tpu.memory_space<vmem>>, %arg6: memref<256x128xbf16, #tpu.memory_space<vmem>>, %arg7: memref<1x128xf32, #tpu.memory_space<vmem>>, %arg8: memref<8x128xf32, #tpu.memory_space<vmem>>) attributes {dimension_semantics = [#tpu.dimension_semantics<parallel>], iteration_bounds = array<i64: 1>, scalar_prefetch = 0 : i64, scratch_operands = 0 : i64, tpu.core_type = #tpu.core_type<tc>, window_params = [{transform_indices = @transform_0, window_bounds = array<i64: 8, 8>}, {pipeline_mode = #tpu.pipeline_mode<synchronous>, transform_indices = @transform_1, window_bounds = array<i64: 8, 256>}, {pipeline_mode = #tpu.pipeline_mode<synchronous>, transform_indices = @transform_2, window_bounds = array<i64: 1, 256>}, {pipeline_mode = #tpu.pipeline_mode<synchronous>, transform_indices = @transform_3, window_bounds = array<i64: 256, 256>}, {pipeline_mode = #tpu.pipeline_mode<synchronous>, transform_indices = @transform_4, window_bounds = array<i64: 1, 256>}, {pipeline_mode = #tpu.pipeline_mode<synchronous>, transform_indices = @transform_5, window_bounds = array<i64: 256, 128>}, {pipeline_mode = #tpu.pipeline_mode<synchronous>, transform_indices = @transform_6, window_bounds = array<i64: 1, 128>}, {transform_indices = @transform_7, window_bounds = array<i64: 8, 128>}]} {
    %c0 = arith.constant 0 : index
    %c0_0 = arith.constant 0 : index
    %0 = vector.load %arg1[%c0, %c0_0] : memref<8x8xbf16, #tpu.memory_space<vmem>>, vector<8x8xbf16>
    %c0_1 = arith.constant 0 : index
    %c0_2 = arith.constant 0 : index
    %1 = vector.load %arg2[%c0_1, %c0_2] : memref<8x256xbf16, #tpu.memory_space<vmem>>, vector<8x256xbf16>
    %cst = arith.constant dense<0.000000e+00> : vector<8x256xf32>
    %2 = tpu.matmul %0, %1, %cst {dimension_numbers = #tpu.dot_dimension_numbers<[1], [0], [0], [1], [0, 0, 1, 1], [], []>} : vector<8x8xbf16>, vector<8x256xbf16>, vector<8x256xf32> -> vector<8x256xf32>
    %c0_3 = arith.constant 0 : index
    %c0_4 = arith.constant 0 : index
    %3 = vector.load %arg3[%c0_3, %c0_4] : memref<1x256xf32, #tpu.memory_space<vmem>>, vector<1x256xf32>
    %4 = vector.broadcast %3 : vector<1x256xf32> to vector<8x256xf32>
    %5 = arith.addf %2, %4 : vector<8x256xf32>
    %cst_5 = arith.constant 0.000000e+00 : f32
    %6 = vector.broadcast %cst_5 : f32 to vector<8x256xf32>
    %7 = arith.maximumf %5, %6 : vector<8x256xf32>
    %8 = arith.truncf %7 : vector<8x256xf32> to vector<8x256xbf16>
    %c0_6 = arith.constant 0 : index
    %c0_7 = arith.constant 0 : index
    %9 = vector.load %arg4[%c0_6, %c0_7] : memref<256x256xbf16, #tpu.memory_space<vmem>>, vector<256x256xbf16>
    %cst_8 = arith.constant dense<0.000000e+00> : vector<8x256xf32>
    %10 = tpu.matmul %8, %9, %cst_8 {dimension_numbers = #tpu.dot_dimension_numbers<[1], [0], [0], [1], [0, 0, 1, 1], [], []>} : vector<8x256xbf16>, vector<256x256xbf16>, vector<8x256xf32> -> vector<8x256xf32>
    %c0_9 = arith.constant 0 : index
    %c0_10 = arith.constant 0 : index
    %11 = vector.load %arg5[%c0_9, %c0_10] : memref<1x256xf32, #tpu.memory_space<vmem>>, vector<1x256xf32>
    %12 = vector.broadcast %11 : vector<1x256xf32> to vector<8x256xf32>
    %13 = arith.addf %10, %12 : vector<8x256xf32>
    %cst_11 = arith.constant 0.000000e+00 : f32
    %14 = vector.broadcast %cst_11 : f32 to vector<8x256xf32>
    %15 = arith.maximumf %13, %14 : vector<8x256xf32>
    %16 = arith.truncf %15 : vector<8x256xf32> to vector<8x256xbf16>
    %c0_12 = arith.constant 0 : index
    %c0_13 = arith.constant 0 : index
    %17 = vector.load %arg6[%c0_12, %c0_13] : memref<256x128xbf16, #tpu.memory_space<vmem>>, vector<256x128xbf16>
    %cst_14 = arith.constant dense<0.000000e+00> : vector<8x128xf32>
    %18 = tpu.matmul %16, %17, %cst_14 {dimension_numbers = #tpu.dot_dimension_numbers<[1], [0], [0], [1], [0, 0, 1, 1], [], []>} : vector<8x256xbf16>, vector<256x128xbf16>, vector<8x128xf32> -> vector<8x128xf32>
    %c0_15 = arith.constant 0 : index
    %c0_16 = arith.constant 0 : index
    %19 = vector.load %arg7[%c0_15, %c0_16] : memref<1x128xf32, #tpu.memory_space<vmem>>, vector<1x128xf32>
    %20 = vector.broadcast %19 : vector<1x128xf32> to vector<8x128xf32>
    %21 = arith.addf %18, %20 : vector<8x128xf32>
    %c0_17 = arith.constant 0 : index
    %c0_18 = arith.constant 0 : index
    %22 = vector.load %arg8[%c0_17, %c0_18] : memref<8x128xf32, #tpu.memory_space<vmem>>, vector<8x128xf32>
    tpu.vector_store %arg8[%c0_17, %c0_18], %21 {strides = array<i32>} : memref<8x128xf32, #tpu.memory_space<vmem>>, vector<8x128xf32>,
    return
  }
  func.func @transform_0(%arg0: i32) -> (i32, i32) {
    %c0_i32 = arith.constant 0 : i32
    %c0_i32_0 = arith.constant 0 : i32
    return %arg0, %c0_i32 : i32, i32
  }
  func.func @transform_1(%arg0: i32) -> (i32, i32) {
    %c0_i32 = arith.constant 0 : i32
    %c0_i32_0 = arith.constant 0 : i32
    %c0_i32_1 = arith.constant 0 : i32
    return %c0_i32, %c0_i32_0 : i32, i32
  }
  func.func @transform_2(%arg0: i32) -> (i32, i32) {
    %c0_i32 = arith.constant 0 : i32
    %c0_i32_0 = arith.constant 0 : i32
    %c0_i32_1 = arith.constant 0 : i32
    return %c0_i32, %c0_i32_0 : i32, i32
  }
  func.func @transform_3(%arg0: i32) -> (i32, i32) {
    %c0_i32 = arith.constant 0 : i32
    %c0_i32_0 = arith.constant 0 : i32
    %c0_i32_1 = arith.constant 0 : i32
    return %c0_i32, %c0_i32_0 : i32, i32
  }
  func.func @transform_4(%arg0: i32) -> (i32, i32) {
    %c0_i32 = arith.constant 0 : i32
    %c0_i32_0 = arith.constant 0 : i32
    %c0_i32_1 = arith.constant 0 : i32
    return %c0_i32, %c0_i32_0 : i32, i32
  }
  func.func @transform_5(%arg0: i32) -> (i32, i32) {
    %c0_i32 = arith.constant 0 : i32
    %c0_i32_0 = arith.constant 0 : i32
    %c0_i32_1 = arith.constant 0 : i32
    return %c0_i32, %c0_i32_0 : i32, i32
  }
  func.func @transform_6(%arg0: i32) -> (i32, i32) {
    %c0_i32 = arith.constant 0 : i32
    %c0_i32_0 = arith.constant 0 : i32
    %c0_i32_1 = arith.constant 0 : i32
    return %c0_i32, %c0_i32_0 : i32, i32
  }
  func.func @transform_7(%arg0: i32) -> (i32, i32) {
    %c0_i32 = arith.constant 0 : i32
    %c0_i32_0 = arith.constant 0 : i32
    return %arg0, %c0_i32 : i32, i32
  }
}

</mosaic_0001>

<llo_original>
// kernel: tpu_custom_call.1
$region0: #{tpu_custom_call.1}
  #allocation0 [shape = 'u32[]', space=smem, size = 0x4, offset = 0x4, fixed_abs, tag = 'smem constant byte address 0x4 - core index']
  #allocation1 [shape = 'u32[144,128]{1,0:T(1,128)}', space=vmem, size = 0x12000, scoped, tag = 'internal scratch']
  %s0 = inlined_call_operand.hbm [shape: bf16[2,8], index: 0, kind: input, shape index: {}]
  %s1 = inlined_call_operand.hbm [shape: bf16[8,256], index: 1, kind: input, shape index: {}]
  %s2 = inlined_call_operand.vmem [shape: f32[1,256], index: 2, kind: input, shape index: {}]
  %s3 = inlined_call_operand.hbm [shape: bf16[256,256], index: 3, kind: input, shape index: {}]
  %s4 = inlined_call_operand.vmem [shape: f32[1,256], index: 4, kind: input, shape index: {}]
  %s5 = inlined_call_operand.hbm [shape: bf16[256,128], index: 5, kind: input, shape index: {}]
  %s6 = inlined_call_operand.vmem [shape: f32[1,128], index: 6, kind: input, shape index: {}]
  %s7 = inlined_call_operand.hbm [shape: f32[2,128], index: 7, kind: output, shape index: {}]
  %s8 = sld [smem:[#allocation0]]
  $region54: #{tpu_custom_call.1} parent=0
    _
  %s10 = ssub.s32 1, %s8
  %s11 = scalar_select 0, %s10, %s8
  $region1: #{tpu_custom_call.1} parent=0
    #allocation2 [shape = 'u8[2048]{0}', space=vmem, size = 0x800, scoped, tag = 'input window, operand 0, single buffered']
    #allocation3 [shape = 's32[1]{0}', space=sflag, size = 0x4, scoped, tag = 'scoped memory for tpu_custom_call.1']
    #allocation4 [shape = 's32[1]{0}', space=sflag, size = 0x4, scoped, tag = 'scoped memory for tpu_custom_call.1']
    #allocation5 [shape = 'u8[4096]{0}', space=vmem, size = 0x1000, scoped, tag = 'input window, operand 1, single buffered']
    #allocation6 [shape = 's32[1]{0}', space=sflag, size = 0x4, scoped, tag = 'scoped memory for tpu_custom_call.1']
    #allocation7 [shape = 'u8[131072]{0}', space=vmem, size = 0x20000, scoped, tag = 'input window, operand 3, single buffered']
    #allocation8 [shape = 'u8[65536]{0}', space=vmem, size = 0x10000, scoped, tag = 'input window, operand 5, single buffered']
    #allocation9 [shape = 's32[1]{0}', space=sflag, size = 0x4, scoped, tag = 'scoped memory for tpu_custom_call.1']
    #allocation10 [shape = 'u8[4096]{0}', space=vmem, size = 0x1000, scoped, tag = 'output window, operand 0, single buffered']
    %12 = vsyncpa [#allocation3], 0
    %13 = vsyncpa [#allocation6], 0
    %14 = vsyncpa [#allocation9], 0
    %15 = vsyncpa [#allocation4], 0
    // Predicated region
    $region2: #{tpu_custom_call.1} parent=1 // pred_check
      _
    $region3: #{tpu_custom_call.1} parent=1 // pred_check_branch
      %17 = sbr.rel (0) target = $region5
    $region4: #{tpu_custom_call.1} parent=1 // pred_region
      %s19 = ssub.s32 64, 16
      %20 = vsyncadd [#allocation3], %s19
      %s21 = sshll.u32 [#allocation2], 4
      %s22 = int_to_ptr.vmem [resolvable:$true] %s21
      %27 = dma.hbm_to_vmem [thread:$0]  %s0, 16, %s22, [#allocation3], 16, 16, 1
    $region5: #{tpu_custom_call.1} parent=1 // pred_fallthru
      _
    // Predicated region
    $region6: #{tpu_custom_call.1} parent=1 // pred_check
      _
    $region7: #{tpu_custom_call.1} parent=1 // pred_check_branch
      %29 = sbr.rel (0) target = $region9
    $region8: #{tpu_custom_call.1} parent=1 // pred_region
      %s31 = ssub.s32 128, 128
      %32 = vsyncadd [#allocation6], %s31
      %s34 = sshll.u32 [#allocation5], 4
      %s35 = int_to_ptr.vmem [resolvable:$true] %s34
      %37 = dma.hbm_to_vmem [thread:$0]  %s1, 128, %s35, [#allocation6]
    $region9: #{tpu_custom_call.1} parent=1 // pred_fallthru
      _
    // Predicated region
    $region10: #{tpu_custom_call.1} parent=1 // pred_check
      _
    $region11: #{tpu_custom_call.1} parent=1 // pred_check_branch
      %39 = sbr.rel (0) target = $region13
    $region12: #{tpu_custom_call.1} parent=1 // pred_region
      _
    $region13: #{tpu_custom_call.1} parent=1 // pred_fallthru
      _
    // Predicated region
    $region14: #{tpu_custom_call.1} parent=1 // pred_check
      _
    $region15: #{tpu_custom_call.1} parent=1 // pred_check_branch
      %41 = sbr.rel (0) target = $region17
    $region16: #{tpu_custom_call.1} parent=1 // pred_region
      %s43 = ssub.s32 4096, 4096
      %44 = vsyncadd [#allocation6], %s43
      %s45 = sshll.u32 [#allocation7], 4
      %s46 = int_to_ptr.vmem [resolvable:$true] %s45
      %51 = dma.hbm_to_vmem [thread:$0]  %s3, 4096, %s46, [#allocation6], 128, 128, 8
    $region17: #{tpu_custom_call.1} parent=1 // pred_fallthru
      _
    // Predicated region
    $region18: #{tpu_custom_call.1} parent=1 // pred_check
      _
    $region19: #{tpu_custom_call.1} parent=1 // pred_check_branch
      %53 = sbr.rel (0) target = $region21
    $region20: #{tpu_custom_call.1} parent=1 // pred_region
      _
    $region21: #{tpu_custom_call.1} parent=1 // pred_fallthru
      _
    // Predicated region
    $region22: #{tpu_custom_call.1} parent=1 // pred_check
      _
    $region23: #{tpu_custom_call.1} parent=1 // pred_check_branch
      %55 = sbr.rel (0) target = $region25
    $region24: #{tpu_custom_call.1} parent=1 // pred_region
      %s57 = ssub.s32 2048, 2048
      %58 = vsyncadd [#allocation9], %s57
      %s59 = sshll.u32 [#allocation8], 4
      %s60 = int_to_ptr.vmem [resolvable:$true] %s59
      %65 = dma.hbm_to_vmem [thread:$0]  %s5, 2048, %s60, [#allocation9], 64, 64, 4
    $region25: #{tpu_custom_call.1} parent=1 // pred_fallthru
      _
    // Predicated region
    $region26: #{tpu_custom_call.1} parent=1 // pred_check
      _
    $region27: #{tpu_custom_call.1} parent=1 // pred_check_branch
      %67 = sbr.rel (0) target = $region29
    $region28: #{tpu_custom_call.1} parent=1 // pred_region
      _
    $region29: #{tpu_custom_call.1} parent=1 // pred_fallthru
      _
    // Predicated region
    $region30: #{tpu_custom_call.1} parent=1 // pred_check
      _
    $region31: #{tpu_custom_call.1} parent=1 // pred_check_branch
      %69 = sbr.rel (0) target = $region33
    $region32: #{tpu_custom_call.1} parent=1 // pred_region
      %70 = dma.done [#allocation3], 64
    $region33: #{tpu_custom_call.1} parent=1 // pred_fallthru
      _
    // Predicated region
    $region34: #{tpu_custom_call.1} parent=1 // pred_check
      _
    $region35: #{tpu_custom_call.1} parent=1 // pred_check_branch
      %72 = sbr.rel (0) target = $region37
    $region36: #{tpu_custom_call.1} parent=1 // pred_region
      %73 = dma.done [#allocation6], 128
    $region37: #{tpu_custom_call.1} parent=1 // pred_fallthru
      _
    // Predicated region
    $region38: #{tpu_custom_call.1} parent=1 // pred_check
      _
    $region39: #{tpu_custom_call.1} parent=1 // pred_check_branch
      %75 = sbr.rel (0) target = $region41
    $region40: #{tpu_custom_call.1} parent=1 // pred_region
      %76 = dma.done [#allocation6], 4096
    $region41: #{tpu_custom_call.1} parent=1 // pred_fallthru
      _
    // Predicated region
    $region42: #{tpu_custom_call.1} parent=1 // pred_check
      _
    $region43: #{tpu_custom_call.1} parent=1 // pred_check_branch
      %78 = sbr.rel (0) target = $region45
    $region44: #{tpu_custom_call.1} parent=1 // pred_region
      %79 = dma.done [#allocation9], 2048
    $region45: #{tpu_custom_call.1} parent=1 // pred_fallthru
      _
    %v81 = vld [vmem:[#allocation2] sm:$0x1]
    %v82 = vld [vmem:[#allocation2 + $0x1] sm:$0x1]
    %v83 = vld [vmem:[#allocation2 + $0x2] sm:$0x1]
    %v84 = vld [vmem:[#allocation2 + $0x3] sm:$0x1]
    %v85 = vld [vmem:[#allocation5] sm:$0xff]
    %v86 = vld [vmem:[%s2] sm:$0x3]
    %v88 = vlaneseq
    %v89 = vshrl.u32 %v88, 7
    %v90 = vsub.s32 0, %v89
    %v91 = vrot.slane %v86, %v90
    %v92 = vlaneseq
    %v93 = vshrl.u32 %v92, 7
    %v94 = vsub.s32 1, %v93
    %v95 = vrot.slane %v86, %v94
    %v102 = vcombine.low %v81, %v82
    %v103 = vcombine.low %v83, %v84
    %v105 = vunpack.c.l.s4 1966171168
    %v106 = vunpack.c.0.s8 %v105
    %v107 = vlaneseq
    %v108 = vshrl.u32 %v107, 7
    %v109 = vsub.s32 %v106, %v108
    %v110 = vrot.slane %v102, %v109
    %v112 = vunpack.c.l.s4 1966171168
    %v113 = vunpack.c.0.s8 %v112
    %v114 = vlaneseq
    %v115 = vshrl.u32 %v114, 7
    %v116 = vsub.s32 %v113, %v115
    %v117 = vrot.slane %v103, %v116
    %v118 = vcombine.low %v110, %v117
    %v120 = vunpack.c.l.s4 1966171168
    %v121 = vunpack.c.0.s8 %v120
    %v122 = vlaneseq
    %v123 = vshrl.u32 %v122, 7
    %v124 = vsub.s32 %v121, %v123
    %v125 = vrot.slane %v118, %v124
    %v127 = vunpack.c.l.b16 %v85
    %v128 = vunpack.c.h.b16 %v85
    %v129 = vpack.c.b16 %v127, %v127
    %v130 = vpack.c.b16 %v128, %v128
    %vm131 = vcmask 64512
    %v133 = vsel %vm131, %v125, 0
    %vm135 = vcmask 1043456
    %v137 = vsel %vm135, %v129, 0
    %v140 = vsel %vm135, %v130, 0
    %142 = vmatprep.subr.bf16.mxu0 %v140
    %143 = vmatpush1.bf16.msra.mxu0 %v137
    %144 = vmatprep.subr.bf16.mxu0 0
    %145 = vmatpush1.bf16.msra.mxu0 0
    %146 = vmatprep.subr.bf16.mxu0 0
    %147 = vmatpush1.bf16.msra.mxu0 0
    %148 = vmatprep.subr.bf16.mxu0 0
    %149 = vmatpush1.bf16.msra.mxu0 0
    %150 = vmatprep.subr.bf16.mxu0 0
    %151 = vmatpush1.bf16.msra.mxu0 0
    %152 = vmatprep.subr.bf16.mxu0 0
    %153 = vmatpush1.bf16.msra.mxu0 0
    %154 = vmatprep.subr.bf16.mxu0 0
    %155 = vmatpush1.bf16.msra.mxu0 0
    %156 = vmatprep.subr.bf16.mxu0 0
    %157 = vmatpush1.bf16.msra.mxu0 0
    %158 = vmatprep.subr.bf16.mxu0 0
    %159 = vmatpush1.bf16.msra.mxu0 0
    %160 = vmatprep.subr.bf16.mxu0 0
    %161 = vmatpush1.bf16.msra.mxu0 0
    %162 = vmatprep.subr.bf16.mxu0 0
    %163 = vmatpush1.bf16.msra.mxu0 0
    %164 = vmatprep.subr.bf16.mxu0 0
    %165 = vmatpush1.bf16.msra.mxu0 0
    %166 = vmatprep.subr.bf16.mxu0 0
    %167 = vmatpush1.bf16.msra.mxu0 0
    %168 = vmatprep.subr.bf16.mxu0 0
    %169 = vmatpush1.bf16.msra.mxu0 0
    %170 = vmatprep.subr.bf16.mxu0 0
    %171 = vmatpush1.bf16.msra.mxu0 0
    %172 = vmatprep.subr.bf16.mxu0 0
    %173 = vmatpush1.bf16.msra.mxu0 0
    %174 = vmatprep.mubr.bf16.mxu0 0
    %175 = vmatmul.mubr.bf16.gmra.mrb[0].mxu0 %v133
    %v176 = vpop.f32.mrb[0].mxu0
    %v177 = vadd.f32 %v91, %v176
    %v178 = vpop.f32.mrb[0].mxu0
    %v179 = vadd.f32 %v95, %v178
    %v180 = vpop.f32.mrb[0].mxu0
    %v181 = vpop.f32.mrb[0].mxu0
    %182 = vdwg.mxu0
    %v183 = vmax.f32 %v177, 0.0
    %v184 = vmax.f32 %v179, 0.0
    %v185 = vpack.c.bf16 %v183, %v183
    %v186 = vpack.c.bf16 %v184, %v184
    %v187 = vld [vmem:[#allocation7] sm:$0xff]
    %v188 = vld [vmem:[#allocation7 + $0x8] sm:$0xff]
    %v189 = vld [vmem:[#allocation7 + $0x10] sm:$0xff]
    %v190 = vld [vmem:[#allocation7 + $0x18] sm:$0xff]
    %v191 = vld [vmem:[#allocation7 + $0x20] sm:$0xff]
    %v192 = vld [vmem:[#allocation7 + $0x28] sm:$0xff]
    %v193 = vld [vmem:[#allocation7 + $0x30] sm:$0xff]
    %v194 = vld [vmem:[#allocation7 + $0x38] sm:$0xff]
    %v195 = vld [vmem:[#allocation7 + $0x40] sm:$0xff]
    %v196 = vld [vmem:[#allocation7 + $0x48] sm:$0xff]
    %v197 = vld [vmem:[#allocation7 + $0x50] sm:$0xff]
    %v198 = vld [vmem:[#allocation7 + $0x58] sm:$0xff]
    %v199 = vld [vmem:[#allocation7 + $0x60] sm:$0xff]
    %v200 = vld [vmem:[#allocation7 + $0x68] sm:$0xff]
    %v201 = vld [vmem:[#allocation7 + $0x70] sm:$0xff]
    %v202 = vld [vmem:[#allocation7 + $0x78] sm:$0xff]
    %v203 = vld [vmem:[#allocation7 + $0x80] sm:$0xff]
    %v204 = vld [vmem:[#allocation7 + $0x88] sm:$0xff]
    %v205 = vld [vmem:[#allocation7 + $0x90] sm:$0xff]
    %v206 = vld [vmem:[#allocation7 + $0x98] sm:$0xff]
    %v207 = vld [vmem:[#allocation7 + $0xa0] sm:$0xff]
    %v208 = vld [vmem:[#allocation7 + $0xa8] sm:$0xff]
    %v209 = vld [vmem:[#allocation7 + $0xb0] sm:$0xff]
    %v210 = vld [vmem:[#allocation7 + $0xb8] sm:$0xff]
    %v211 = vld [vmem:[#allocation7 + $0xc0] sm:$0xff]
    %v212 = vld [vmem:[#allocation7 + $0xc8] sm:$0xff]
    %v213 = vld [vmem:[#allocation7 + $0xd0] sm:$0xff]
    %v214 = vld [vmem:[#allocation7 + $0xd8] sm:$0xff]
    %v215 = vld [vmem:[#allocation7 + $0xe0] sm:$0xff]
    %v216 = vld [vmem:[#allocation7 + $0xe8] sm:$0xff]
    %v217 = vld [vmem:[#allocation7 + $0xf0] sm:$0xff]
    %v218 = vld [vmem:[#allocation7 + $0xf8] sm:$0xff]
    %v219 = vld [vmem:[%s4] sm:$0x3]
    %v221 = vlaneseq
    %v222 = vshrl.u32 %v221, 7
    %v223 = vsub.s32 0, %v222
    %v224 = vrot.slane %v219, %v223
    %v225 = vlaneseq
    %v226 = vshrl.u32 %v225, 7
    %v227 = vsub.s32 1, %v226
    %v228 = vrot.slane %v219, %v227
    %v263 = vunpack.c.l.b16 %v187
    %v264 = vunpack.c.h.b16 %v187
    %v265 = vunpack.c.l.b16 %v188
    %v266 = vunpack.c.h.b16 %v188
    %v267 = vunpack.c.l.b16 %v189
    %v268 = vunpack.c.h.b16 %v189
    %v269 = vunpack.c.l.b16 %v190
    %v270 = vunpack.c.h.b16 %v190
    %v271 = vunpack.c.l.b16 %v191
    %v272 = vunpack.c.h.b16 %v191
    %v273 = vunpack.c.l.b16 %v192
    %v274 = vunpack.c.h.b16 %v192
    %v275 = vunpack.c.l.b16 %v193
    %v276 = vunpack.c.h.b16 %v193
    %v277 = vunpack.c.l.b16 %v194
    %v278 = vunpack.c.h.b16 %v194
    %v279 = vunpack.c.l.b16 %v195
    %v280 = vunpack.c.h.b16 %v195
    %v281 = vunpack.c.l.b16 %v196
    %v282 = vunpack.c.h.b16 %v196
    %v283 = vunpack.c.l.b16 %v197
    %v284 = vunpack.c.h.b16 %v197
    %v285 = vunpack.c.l.b16 %v198
    %v286 = vunpack.c.h.b16 %v198
    %v287 = vunpack.c.l.b16 %v199
    %v288 = vunpack.c.h.b16 %v199
    %v289 = vunpack.c.l.b16 %v200
    %v290 = vunpack.c.h.b16 %v200
    %v291 = vunpack.c.l.b16 %v201
    %v292 = vunpack.c.h.b16 %v201
    %v293 = vunpack.c.l.b16 %v202
    %v294 = vunpack.c.h.b16 %v202
    %v295 = vunpack.c.l.b16 %v203
    %v296 = vunpack.c.h.b16 %v203
    %v297 = vunpack.c.l.b16 %v204
    %v298 = vunpack.c.h.b16 %v204
    %v299 = vunpack.c.l.b16 %v205
    %v300 = vunpack.c.h.b16 %v205
    %v301 = vunpack.c.l.b16 %v206
    %v302 = vunpack.c.h.b16 %v206
    %v303 = vunpack.c.l.b16 %v207
    %v304 = vunpack.c.h.b16 %v207
    %v305 = vunpack.c.l.b16 %v208
    %v306 = vunpack.c.h.b16 %v208
    %v307 = vunpack.c.l.b16 %v209
    %v308 = vunpack.c.h.b16 %v209
    %v309 = vunpack.c.l.b16 %v210
    %v310 = vunpack.c.h.b16 %v210
    %v311 = vunpack.c.l.b16 %v211
    %v312 = vunpack.c.h.b16 %v211
    %v313 = vunpack.c.l.b16 %v212
    %v314 = vunpack.c.h.b16 %v212
    %v315 = vunpack.c.l.b16 %v213
    %v316 = vunpack.c.h.b16 %v213
    %v317 = vunpack.c.l.b16 %v214
    %v318 = vunpack.c.h.b16 %v214
    %v319 = vunpack.c.l.b16 %v215
    %v320 = vunpack.c.h.b16 %v215
    %v321 = vunpack.c.l.b16 %v216
    %v322 = vunpack.c.h.b16 %v216
    %v323 = vunpack.c.l.b16 %v217
    %v324 = vunpack.c.h.b16 %v217
    %v325 = vunpack.c.l.b16 %v218
    %v326 = vunpack.c.h.b16 %v218
    %v327 = vpack.c.b16 %v265, %v263
    %v328 = vpack.c.b16 %v266, %v264
    %v329 = vpack.c.b16 %v269, %v267
    %v330 = vpack.c.b16 %v270, %v268
    %v331 = vpack.c.b16 %v273, %v271
    %v332 = vpack.c.b16 %v274, %v272
    %v333 = vpack.c.b16 %v277, %v275
    %v334 = vpack.c.b16 %v278, %v276
    %v335 = vpack.c.b16 %v281, %v279
    %v336 = vpack.c.b16 %v282, %v280
    %v337 = vpack.c.b16 %v285, %v283
    %v338 = vpack.c.b16 %v286, %v284
    %v339 = vpack.c.b16 %v289, %v287
    %v340 = vpack.c.b16 %v290, %v288
    %v341 = vpack.c.b16 %v293, %v291
    %v342 = vpack.c.b16 %v294, %v292
    %v343 = vpack.c.b16 %v297, %v295
    %v344 = vpack.c.b16 %v298, %v296
    %v345 = vpack.c.b16 %v301, %v299
    %v346 = vpack.c.b16 %v302, %v300
    %v347 = vpack.c.b16 %v305, %v303
    %v348 = vpack.c.b16 %v306, %v304
    %v349 = vpack.c.b16 %v309, %v307
    %v350 = vpack.c.b16 %v310, %v308
    %v351 = vpack.c.b16 %v313, %v311
    %v352 = vpack.c.b16 %v314, %v312
    %v353 = vpack.c.b16 %v317, %v315
    %v354 = vpack.c.b16 %v318, %v316
    %v355 = vpack.c.b16 %v321, %v319
    %v356 = vpack.c.b16 %v322, %v320
    %v357 = vpack.c.b16 %v325, %v323
    %v358 = vpack.c.b16 %v326, %v324
    %391 = vmatprep.subr.bf16.mxu0 %v328
    %392 = vmatpush1.bf16.msra.mxu0 %v327
    %393 = vmatprep.subr.bf16.mxu0 %v330
    %394 = vmatpush1.bf16.msra.mxu0 %v329
    %395 = vmatprep.subr.bf16.mxu0 %v332
    %396 = vmatpush1.bf16.msra.mxu0 %v331
    %397 = vmatprep.subr.bf16.mxu0 %v334
    %398 = vmatpush1.bf16.msra.mxu0 %v333
    %399 = vmatprep.subr.bf16.mxu0 %v336
    %400 = vmatpush1.bf16.msra.mxu0 %v335
    %401 = vmatprep.subr.bf16.mxu0 %v338
    %402 = vmatpush1.bf16.msra.mxu0 %v337
    %403 = vmatprep.subr.bf16.mxu0 %v340
    %404 = vmatpush1.bf16.msra.mxu0 %v339
    %405 = vmatprep.subr.bf16.mxu0 %v342
    %406 = vmatpush1.bf16.msra.mxu0 %v341
    %407 = vmatprep.subr.bf16.mxu0 %v344
    %408 = vmatpush1.bf16.msra.mxu0 %v343
    %409 = vmatprep.subr.bf16.mxu0 %v346
    %410 = vmatpush1.bf16.msra.mxu0 %v345
    %411 = vmatprep.subr.bf16.mxu0 %v348
    %412 = vmatpush1.bf16.msra.mxu0 %v347
    %413 = vmatprep.subr.bf16.mxu0 %v350
    %414 = vmatpush1.bf16.msra.mxu0 %v349
    %415 = vmatprep.subr.bf16.mxu0 %v352
    %416 = vmatpush1.bf16.msra.mxu0 %v351
    %417 = vmatprep.subr.bf16.mxu0 %v354
    %418 = vmatpush1.bf16.msra.mxu0 %v353
    %419 = vmatprep.subr.bf16.mxu0 %v356
    %420 = vmatpush1.bf16.msra.mxu0 %v355
    %421 = vmatprep.subr.bf16.mxu0 %v358
    %422 = vmatpush1.bf16.msra.mxu0 %v357
    %423 = vmatprep.mubr.bf16.mxu0 %v186
    %424 = vmatmul.mubr.bf16.gmra.mrb[0].mxu0 %v185
    %v425 = vpop.f32.mrb[0].mxu0
    %v426 = vadd.f32 %v224, %v425
    %v427 = vpop.f32.mrb[0].mxu0
    %v428 = vadd.f32 %v228, %v427
    %v429 = vpop.f32.mrb[0].mxu0
    %v430 = vpop.f32.mrb[0].mxu0
    %431 = vdwg.mxu0
    %v432 = vmax.f32 %v426, 0.0
    %v433 = vmax.f32 %v428, 0.0
    %v434 = vpack.c.bf16 %v432, %v432
    %v435 = vpack.c.bf16 %v433, %v433
    %v436 = vld [vmem:[#allocation8] sm:$0xf]
    %v437 = vld [vmem:[#allocation8 + $0x4] sm:$0xf]
    %v438 = vld [vmem:[#allocation8 + $0x8] sm:$0xf]
    %v439 = vld [vmem:[#allocation8 + $0xc] sm:$0xf]
    %v440 = vld [vmem:[#allocation8 + $0x10] sm:$0xf]
    %v441 = vld [vmem:[#allocation8 + $0x14] sm:$0xf]
    %v442 = vld [vmem:[#allocation8 + $0x18] sm:$0xf]
    %v443 = vld [vmem:[#allocation8 + $0x1c] sm:$0xf]
    %v444 = vld [vmem:[#allocation8 + $0x20] sm:$0xf]
    %v445 = vld [vmem:[#allocation8 + $0x24] sm:$0xf]
    %v446 = vld [vmem:[#allocation8 + $0x28] sm:$0xf]
    %v447 = vld [vmem:[#allocation8 + $0x2c] sm:$0xf]
    %v448 = vld [vmem:[#allocation8 + $0x30] sm:$0xf]
    %v449 = vld [vmem:[#allocation8 + $0x34] sm:$0xf]
    %v450 = vld [vmem:[#allocation8 + $0x38] sm:$0xf]
    %v451 = vld [vmem:[#allocation8 + $0x3c] sm:$0xf]
    %v452 = vld [vmem:[#allocation8 + $0x40] sm:$0xf]
    %v453 = vld [vmem:[#allocation8 + $0x44] sm:$0xf]
    %v454 = vld [vmem:[#allocation8 + $0x48] sm:$0xf]
    %v455 = vld [vmem:[#allocation8 + $0x4c] sm:$0xf]
    %v456 = vld [vmem:[#allocation8 + $0x50] sm:$0xf]
    %v457 = vld [vmem:[#allocation8 + $0x54] sm:$0xf]
    %v458 = vld [vmem:[#allocation8 + $0x58] sm:$0xf]
    %v459 = vld [vmem:[#allocation8 + $0x5c] sm:$0xf]
    %v460 = vld [vmem:[#allocation8 + $0x60] sm:$0xf]
    %v461 = vld [vmem:[#allocation8 + $0x64] sm:$0xf]
    %v462 = vld [vmem:[#allocation8 + $0x68] sm:$0xf]
    %v463 = vld [vmem:[#allocation8 + $0x6c] sm:$0xf]
    %v464 = vld [vmem:[#allocation8 + $0x70] sm:$0xf]
    %v465 = vld [vmem:[#allocation8 + $0x74] sm:$0xf]
    %v466 = vld [vmem:[#allocation8 + $0x78] sm:$0xf]
    %v467 = vld [vmem:[#allocation8 + $0x7c] sm:$0xf]
    %v468 = vld [vmem:[%s6] sm:$0x1]
    %v470 = vlaneseq
    %v471 = vshrl.u32 %v470, 7
    %v472 = vsub.s32 0, %v471
    %v473 = vrot.slane %v468, %v472
    %v507 = vunpack.c.l.b16 %v436
    %v508 = vunpack.c.l.b16 %v437
    %v509 = vunpack.c.l.b16 %v438
    %v510 = vunpack.c.l.b16 %v439
    %v511 = vunpack.c.l.b16 %v440
    %v512 = vunpack.c.l.b16 %v441
    %v513 = vunpack.c.l.b16 %v442
    %v514 = vunpack.c.l.b16 %v443
    %v515 = vunpack.c.l.b16 %v444
    %v516 = vunpack.c.l.b16 %v445
    %v517 = vunpack.c.l.b16 %v446
    %v518 = vunpack.c.l.b16 %v447
    %v519 = vunpack.c.l.b16 %v448
    %v520 = vunpack.c.l.b16 %v449
    %v521 = vunpack.c.l.b16 %v450
    %v522 = vunpack.c.l.b16 %v451
    %v523 = vunpack.c.l.b16 %v452
    %v524 = vunpack.c.l.b16 %v453
    %v525 = vunpack.c.l.b16 %v454
    %v526 = vunpack.c.l.b16 %v455
    %v527 = vunpack.c.l.b16 %v456
    %v528 = vunpack.c.l.b16 %v457
    %v529 = vunpack.c.l.b16 %v458
    %v530 = vunpack.c.l.b16 %v459
    %v531 = vunpack.c.l.b16 %v460
    %v532 = vunpack.c.l.b16 %v461
    %v533 = vunpack.c.l.b16 %v462
    %v534 = vunpack.c.l.b16 %v463
    %v535 = vunpack.c.l.b16 %v464
    %v536 = vunpack.c.l.b16 %v465
    %v537 = vunpack.c.l.b16 %v466
    %v538 = vunpack.c.l.b16 %v467
    %v539 = vpack.c.b16 %v508, %v507
    %v540 = vpack.c.b16 %v510, %v509
    %v541 = vpack.c.b16 %v512, %v511
    %v542 = vpack.c.b16 %v514, %v513
    %v543 = vpack.c.b16 %v516, %v515
    %v544 = vpack.c.b16 %v518, %v517
    %v545 = vpack.c.b16 %v520, %v519
    %v546 = vpack.c.b16 %v522, %v521
    %v547 = vpack.c.b16 %v524, %v523
    %v548 = vpack.c.b16 %v526, %v525
    %v549 = vpack.c.b16 %v528, %v527
    %v550 = vpack.c.b16 %v530, %v529
    %v551 = vpack.c.b16 %v532, %v531
    %v552 = vpack.c.b16 %v534, %v533
    %v553 = vpack.c.b16 %v536, %v535
    %v554 = vpack.c.b16 %v538, %v537
    %571 = vmatprep.subr.bf16.mxu0 0
    %572 = vmatpush1.bf16.msra.mxu0 %v539
    %573 = vmatprep.subr.bf16.mxu0 0
    %574 = vmatpush1.bf16.msra.mxu0 %v540
    %575 = vmatprep.subr.bf16.mxu0 0
    %576 = vmatpush1.bf16.msra.mxu0 %v541
    %577 = vmatprep.subr.bf16.mxu0 0
    %578 = vmatpush1.bf16.msra.mxu0 %v542
    %579 = vmatprep.subr.bf16.mxu0 0
    %580 = vmatpush1.bf16.msra.mxu0 %v543
    %581 = vmatprep.subr.bf16.mxu0 0
    %582 = vmatpush1.bf16.msra.mxu0 %v544
    %583 = vmatprep.subr.bf16.mxu0 0
    %584 = vmatpush1.bf16.msra.mxu0 %v545
    %585 = vmatprep.subr.bf16.mxu0 0
    %586 = vmatpush1.bf16.msra.mxu0 %v546
    %587 = vmatprep.subr.bf16.mxu0 0
    %588 = vmatpush1.bf16.msra.mxu0 %v547
    %589 = vmatprep.subr.bf16.mxu0 0
    %590 = vmatpush1.bf16.msra.mxu0 %v548
    %591 = vmatprep.subr.bf16.mxu0 0
    %592 = vmatpush1.bf16.msra.mxu0 %v549
    %593 = vmatprep.subr.bf16.mxu0 0
    %594 = vmatpush1.bf16.msra.mxu0 %v550
    %595 = vmatprep.subr.bf16.mxu0 0
    %596 = vmatpush1.bf16.msra.mxu0 %v551
    %597 = vmatprep.subr.bf16.mxu0 0
    %598 = vmatpush1.bf16.msra.mxu0 %v552
    %599 = vmatprep.subr.bf16.mxu0 0
    %600 = vmatpush1.bf16.msra.mxu0 %v553
    %601 = vmatprep.subr.bf16.mxu0 0
    %602 = vmatpush1.bf16.msra.mxu0 %v554
    %603 = vmatprep.mubr.bf16.mxu0 %v435
    %604 = vmatmul.mubr.bf16.gmra.mrb[0].mxu0 %v434
    %v605 = vpop.f32.mrb[0].mxu0
    %v606 = vadd.f32 %v473, %v605
    %v607 = vpop.f32.mrb[0].mxu0
    %v608 = vpop.f32.mrb[0].mxu0
    %v609 = vpop.f32.mrb[0].mxu0
    %610 = vdwg.mxu0
    %611 = vst [vmem:[#allocation10] sm:$0xff] %v606
    // Predicated region
    $region46: #{tpu_custom_call.1} parent=1 // pred_check
      _
    $region47: #{tpu_custom_call.1} parent=1 // pred_check_branch
      %613 = sbr.rel (0) target = $region49
    $region48: #{tpu_custom_call.1} parent=1 // pred_region
      %s615 = ssub.s32 128, 32
      %616 = vsyncadd [#allocation4], %s615
      %s617 = sshll.u32 [#allocation10], 4
      %s618 = int_to_ptr.vmem [resolvable:$true] %s617
      %623 = dma.vmem_to_hbm [thread:$0]  %s618, 32, %s7, [#allocation4], 32, 32, 2
    $region49: #{tpu_custom_call.1} parent=1 // pred_fallthru
      _
    // Predicated region
    $region50: #{tpu_custom_call.1} parent=1 // pred_check
      _
    $region51: #{tpu_custom_call.1} parent=1 // pred_check_branch
      %625 = sbr.rel (0) target = $region53
    $region52: #{tpu_custom_call.1} parent=1 // pred_region
      %626 = dma.done [#allocation4], 128
    $region53: #{tpu_custom_call.1} parent=1 // pred_fallthru
      _
    %627 = vsyncpa [#allocation3], 1
    %628 = vsyncpa [#allocation6], 1
    %629 = vsyncpa [#allocation9], 1
    %630 = vsyncpa [#allocation4], 1

</llo_original>
